<compile_context>
chip_gen: v7x
topology: tpu7x:2x2x1
jax: 0.10.0
libtpu: 0.0.40
codegen_flags: <defaults>
</compile_context>

<pallas_src>
import functools

import jax
import jax.numpy as jnp
import numpy as np
from jax.experimental import pallas as pl
from jax.experimental.pallas import tpu as pltpu


def _round_up(x, m):
    return ((x + m - 1) // m) * m


def _latent_paths_kernel(mask_ref, latent_ref, params_ref, out_ref, *, K):
    # mask_ref:   [TB, K]    path-selection weights (one-hot or soft)
    # latent_ref: [TB, D]    latent codes (upcast to f32 in-kernel)
    # params_ref: [4, K, D]  fused params, VMEM-resident across batch tiles
    # out_ref:    [TB, D]
    lat = latent_ref[...].astype(jnp.float32)
    mask = mask_ref[...].astype(jnp.float32)
    p = params_ref[...]

    # mask @ params on the VPU: K is tiny, so an unrolled broadcast-FMA chain
    # beats a degenerate K-deep MXU matmul (and drops the systolic-array pass).
    acc = [None, None, None, None]
    for k in range(K):
        w = mask[:, k:k + 1]                     # [TB, 1] per-row weight
        for s in range(4):
            term = w * p[s, k:k + 1, :]          # [TB,1] * [1,D] -> [TB,D]
            acc[s] = term if acc[s] is None else acc[s] + term
    ss0, ss1 = acc[0], acc[1]
    g0 = jnp.exp(acc[2])                         # gammas = exp(mask @ LOGGAMMA)
    g1 = jnp.exp(acc[3])

    # D_k = latent - support_set_k
    d0 = lat - ss0
    d1 = lat - ss1

    # grad_f = -2 * sum_k( gamma_k * exp(-gamma_k * d_k^2) * d_k )
    #        = -2 * sum_k( t_k * exp(-t_k * d_k) ),  t_k = gamma_k * d_k
    t0 = g0 * d0
    t1 = g1 * d1
    grad = -2.0 * (t0 * jnp.exp(-t0 * d0) + t1 * jnp.exp(-t1 * d1))

    # L2-normalize along features (EUP rsqrt). eps guard: zero grad -> zero
    # output (the PyTorch reference would return NaN for that degenerate row).
    sq = jnp.sum(grad * grad, axis=1, keepdims=True)
    out_ref[...] = grad * jax.lax.rsqrt(jnp.maximum(sq, 1e-24))


def fuse_params(support_sets, loggamma):
    """Build the fused [4, K, D] parameter tensor ONCE at model setup.

    Slabs: 0/1 = support-vector min/max rows, 2/3 = loggamma min/max rows.
    """
    K = support_sets.shape[0]
    D = support_sets.shape[1] // 2
    sv = support_sets.reshape(K, 2, D).astype(jnp.float32)
    lg = loggamma.reshape(K, 2, D).astype(jnp.float32)
    return jnp.concatenate([sv, lg], axis=1).transpose(1, 0, 2)   # [4, K, D]


def latent_paths_forward(latent_code, mask, fused_params, *, tile_b=2048):
    B, D = latent_code.shape
    K = mask.shape[1]
    assert fused_params.shape == (4, K, D)

    # Sublane packing requirement for the latent stream's dtype (8 rows for
    # f32, 16 for bf16, 32 for 8-bit).
    sub = max(8, 32 // latent_code.dtype.itemsize)

    if B <= tile_b:
        # Small/medium batch: prefer >= 2 grid steps so both TensorCores on
        # v7x get work; otherwise use one full-batch block (always legal).
        half = _round_up(pl.cdiv(B, 2), sub)
        TB = half if half < B else B
    else:
        TB = _round_up(tile_b, sub)
    nb = pl.cdiv(B, TB)   # ragged last block handled by Pallas

    kernel = functools.partial(_latent_paths_kernel, K=K)

    cost = pl.CostEstimate(
        flops=B * D * (8 * K + 12),
        transcendentals=4 * B * D + B,
        bytes_accessed=(B * K * mask.dtype.itemsize
                        + B * D * latent_code.dtype.itemsize
                        + 4 * K * D * 4
                        + B * D * 4),
    )

    return pl.pallas_call(
        kernel,
        out_shape=jax.ShapeDtypeStruct((B, D), jnp.float32),
        grid=(nb,),
        in_specs=[
            pl.BlockSpec((TB, K), lambda i: (i, 0)),
            pl.BlockSpec((TB, D), lambda i: (i, 0)),
            # Params resident in VMEM across all batch tiles (constant index map).
            pl.BlockSpec((4, K, D), lambda i: (0, 0, 0)),
        ],
        out_specs=pl.BlockSpec((TB, D), lambda i: (i, 0)),
        compiler_params=pltpu.CompilerParams(
            dimension_semantics=("parallel",)),
        cost_estimate=cost,
    )(mask, latent_code, fused_params)


def build_params(num_paths, base_latent_dim, latent_minima, latent_maxima, l_wgs_beta=0.5):
    """Deterministic parameter construction mirroring LatentPathsModel.__init__."""
    K, D = num_paths, base_latent_dim
    # L_WGS_SUPPORT_SETS: [K, 2, D] with [k, 0, i]=minima[i], [k, 1, i]=maxima[i]
    sv = jnp.stack([latent_minima, latent_maxima], axis=0)          # [2, D]
    sv = jnp.broadcast_to(sv[None, :, :], (K, 2, D)).reshape(K, 2 * D)
    # L_WGS_LOGGAMMA: log( -log(beta) / (max - min)^2 ), same for both rows
    gammas = -jnp.log(jnp.float32(l_wgs_beta)) / (latent_maxima - latent_minima) ** 2
    lg = jnp.broadcast_to(jnp.log(gammas)[None, None, :], (K, 2, D)).reshape(K, 2 * D)
    return sv.astype(jnp.float32), lg.astype(jnp.float32)


def reference_forward(latent_code, mask, support_sets, loggamma):
    """Pure-JAX reference (mirrors the PyTorch forward)."""
    B = latent_code.shape[0]
    D = latent_code.shape[1]
    ss = (mask @ support_sets).reshape(B, 2, D)
    gam = jnp.exp(mask @ loggamma).reshape(B, 2, D)
    Dm = latent_code[:, None, :] - ss
    grad = -2.0 * (gam * jnp.exp(-gam * Dm ** 2) * Dm).sum(axis=1)
    return grad / jnp.linalg.norm(grad, axis=1, keepdims=True)


if __name__ == "__main__":
    key = jax.random.PRNGKey(0)
    k1, k2, k3, k4 = jax.random.split(key, 4)

    B = 8            # batch
    K = 4            # num_paths
    D = 128          # base_latent_dim (diffusion_model_conf.style_ch)

    # Deterministic latent-space statistics (maxima strictly > minima).
    latent_minima = -1.0 - jax.random.uniform(k1, (D,), jnp.float32)
    latent_maxima = 1.0 + jax.random.uniform(k2, (D,), jnp.float32)

    support_sets, loggamma = build_params(K, D, latent_minima, latent_maxima,
                                          l_wgs_beta=0.5)
    fused_params = fuse_params(support_sets, loggamma)   # built once at setup

    # Inputs: latent codes (streamed as bf16 -- the kernel is HBM-bound and
    # upcasts to f32 internally) and a one-hot path-selection mask.
    latent_code = jax.random.normal(k3, (B, D), jnp.float32).astype(jnp.bfloat16)
    path_ids = jax.random.randint(k4, (B,), 0, K)
    mask = jax.nn.one_hot(path_ids, K, dtype=jnp.float32)

    out = latent_paths_forward(latent_code, mask, fused_params)
    out = jax.block_until_ready(out)

    # Reference computed on the same bf16-rounded latent, upcast to f32, so
    # both sides do identical f32 arithmetic and a tight tolerance holds.
    ref = reference_forward(latent_code.astype(jnp.float32), mask,
                            support_sets, loggamma)
    np.testing.assert_allclose(np.asarray(out), np.asarray(ref), rtol=1e-5, atol=1e-5)

    print("KERNEL_OK")
</pallas_src>

<mosaic_0001>
module attributes {stable_mosaic.version = 11 : i64} {
  func.func @_latent_paths_kernel(%arg0: i32, %arg1: memref<8x4xf32, #tpu.memory_space<vmem>>, %arg2: memref<8x128xbf16, #tpu.memory_space<vmem>>, %arg3: memref<4x4x128xf32, #tpu.memory_space<vmem>>, %arg4: memref<8x128xf32, #tpu.memory_space<vmem>>) attributes {dimension_semantics = [#tpu.dimension_semantics<parallel>], iteration_bounds = array<i64: 1>, scalar_prefetch = 0 : i64, scratch_operands = 0 : i64, tpu.core_type = #tpu.core_type<tc>, window_params = [{transform_indices = @transform_0, window_bounds = array<i64: 8, 4>}, {transform_indices = @transform_1, window_bounds = array<i64: 8, 128>}, {pipeline_mode = #tpu.pipeline_mode<synchronous>, transform_indices = @transform_2, window_bounds = array<i64: 4, 4, 128>}, {transform_indices = @transform_3, window_bounds = array<i64: 8, 128>}]} {
    %c0 = arith.constant 0 : index
    %c0_0 = arith.constant 0 : index
    %0 = vector.load %arg2[%c0, %c0_0] : memref<8x128xbf16, #tpu.memory_space<vmem>>, vector<8x128xbf16>
    %1 = arith.extf %0 : vector<8x128xbf16> to vector<8x128xf32>
    %c0_1 = arith.constant 0 : index
    %c0_2 = arith.constant 0 : index
    %2 = vector.load %arg1[%c0_1, %c0_2] : memref<8x4xf32, #tpu.memory_space<vmem>>, vector<8x4xf32>
    %c0_3 = arith.constant 0 : index
    %c0_4 = arith.constant 0 : index
    %c0_5 = arith.constant 0 : index
    %3 = vector.load %arg3[%c0_3, %c0_4, %c0_5] : memref<4x4x128xf32, #tpu.memory_space<vmem>>, vector<4x4x128xf32>
    %4 = vector.extract_strided_slice %2 {offsets = [0, 0], sizes = [8, 1], strides = [1, 1]} : vector<8x4xf32> to vector<8x1xf32>
    %5 = vector.extract_strided_slice %3 {offsets = [0, 0, 0], sizes = [1, 1, 128], strides = [1, 1, 1]} : vector<4x4x128xf32> to vector<1x1x128xf32>
    %6 = vector.shape_cast %5 : vector<1x1x128xf32> to vector<1x128xf32>
    %7 = vector.broadcast %4 : vector<8x1xf32> to vector<8x128xf32>
    %8 = vector.broadcast %6 : vector<1x128xf32> to vector<8x128xf32>
    %9 = arith.mulf %7, %8 : vector<8x128xf32>
    %10 = vector.extract_strided_slice %3 {offsets = [1, 0, 0], sizes = [1, 1, 128], strides = [1, 1, 1]} : vector<4x4x128xf32> to vector<1x1x128xf32>
    %11 = vector.shape_cast %10 : vector<1x1x128xf32> to vector<1x128xf32>
    %12 = vector.broadcast %4 : vector<8x1xf32> to vector<8x128xf32>
    %13 = vector.broadcast %11 : vector<1x128xf32> to vector<8x128xf32>
    %14 = arith.mulf %12, %13 : vector<8x128xf32>
    %15 = vector.extract_strided_slice %3 {offsets = [2, 0, 0], sizes = [1, 1, 128], strides = [1, 1, 1]} : vector<4x4x128xf32> to vector<1x1x128xf32>
    %16 = vector.shape_cast %15 : vector<1x1x128xf32> to vector<1x128xf32>
    %17 = vector.broadcast %4 : vector<8x1xf32> to vector<8x128xf32>
    %18 = vector.broadcast %16 : vector<1x128xf32> to vector<8x128xf32>
    %19 = arith.mulf %17, %18 : vector<8x128xf32>
    %20 = vector.extract_strided_slice %3 {offsets = [3, 0, 0], sizes = [1, 1, 128], strides = [1, 1, 1]} : vector<4x4x128xf32> to vector<1x1x128xf32>
    %21 = vector.shape_cast %20 : vector<1x1x128xf32> to vector<1x128xf32>
    %22 = vector.broadcast %4 : vector<8x1xf32> to vector<8x128xf32>
    %23 = vector.broadcast %21 : vector<1x128xf32> to vector<8x128xf32>
    %24 = arith.mulf %22, %23 : vector<8x128xf32>
    %25 = vector.extract_strided_slice %2 {offsets = [0, 1], sizes = [8, 1], strides = [1, 1]} : vector<8x4xf32> to vector<8x1xf32>
    %26 = vector.extract_strided_slice %3 {offsets = [0, 1, 0], sizes = [1, 1, 128], strides = [1, 1, 1]} : vector<4x4x128xf32> to vector<1x1x128xf32>
    %27 = vector.shape_cast %26 : vector<1x1x128xf32> to vector<1x128xf32>
    %28 = vector.broadcast %25 : vector<8x1xf32> to vector<8x128xf32>
    %29 = vector.broadcast %27 : vector<1x128xf32> to vector<8x128xf32>
    %30 = arith.mulf %28, %29 : vector<8x128xf32>
    %31 = arith.addf %9, %30 : vector<8x128xf32>
    %32 = vector.extract_strided_slice %3 {offsets = [1, 1, 0], sizes = [1, 1, 128], strides = [1, 1, 1]} : vector<4x4x128xf32> to vector<1x1x128xf32>
    %33 = vector.shape_cast %32 : vector<1x1x128xf32> to vector<1x128xf32>
    %34 = vector.broadcast %25 : vector<8x1xf32> to vector<8x128xf32>
    %35 = vector.broadcast %33 : vector<1x128xf32> to vector<8x128xf32>
    %36 = arith.mulf %34, %35 : vector<8x128xf32>
    %37 = arith.addf %14, %36 : vector<8x128xf32>
    %38 = vector.extract_strided_slice %3 {offsets = [2, 1, 0], sizes = [1, 1, 128], strides = [1, 1, 1]} : vector<4x4x128xf32> to vector<1x1x128xf32>
    %39 = vector.shape_cast %38 : vector<1x1x128xf32> to vector<1x128xf32>
    %40 = vector.broadcast %25 : vector<8x1xf32> to vector<8x128xf32>
    %41 = vector.broadcast %39 : vector<1x128xf32> to vector<8x128xf32>
    %42 = arith.mulf %40, %41 : vector<8x128xf32>
    %43 = arith.addf %19, %42 : vector<8x128xf32>
    %44 = vector.extract_strided_slice %3 {offsets = [3, 1, 0], sizes = [1, 1, 128], strides = [1, 1, 1]} : vector<4x4x128xf32> to vector<1x1x128xf32>
    %45 = vector.shape_cast %44 : vector<1x1x128xf32> to vector<1x128xf32>
    %46 = vector.broadcast %25 : vector<8x1xf32> to vector<8x128xf32>
    %47 = vector.broadcast %45 : vector<1x128xf32> to vector<8x128xf32>
    %48 = arith.mulf %46, %47 : vector<8x128xf32>
    %49 = arith.addf %24, %48 : vector<8x128xf32>
    %50 = vector.extract_strided_slice %2 {offsets = [0, 2], sizes = [8, 1], strides = [1, 1]} : vector<8x4xf32> to vector<8x1xf32>
    %51 = vector.extract_strided_slice %3 {offsets = [0, 2, 0], sizes = [1, 1, 128], strides = [1, 1, 1]} : vector<4x4x128xf32> to vector<1x1x128xf32>
    %52 = vector.shape_cast %51 : vector<1x1x128xf32> to vector<1x128xf32>
    %53 = vector.broadcast %50 : vector<8x1xf32> to vector<8x128xf32>
    %54 = vector.broadcast %52 : vector<1x128xf32> to vector<8x128xf32>
    %55 = arith.mulf %53, %54 : vector<8x128xf32>
    %56 = arith.addf %31, %55 : vector<8x128xf32>
    %57 = vector.extract_strided_slice %3 {offsets = [1, 2, 0], sizes = [1, 1, 128], strides = [1, 1, 1]} : vector<4x4x128xf32> to vector<1x1x128xf32>
    %58 = vector.shape_cast %57 : vector<1x1x128xf32> to vector<1x128xf32>
    %59 = vector.broadcast %50 : vector<8x1xf32> to vector<8x128xf32>
    %60 = vector.broadcast %58 : vector<1x128xf32> to vector<8x128xf32>
    %61 = arith.mulf %59, %60 : vector<8x128xf32>
    %62 = arith.addf %37, %61 : vector<8x128xf32>
    %63 = vector.extract_strided_slice %3 {offsets = [2, 2, 0], sizes = [1, 1, 128], strides = [1, 1, 1]} : vector<4x4x128xf32> to vector<1x1x128xf32>
    %64 = vector.shape_cast %63 : vector<1x1x128xf32> to vector<1x128xf32>
    %65 = vector.broadcast %50 : vector<8x1xf32> to vector<8x128xf32>
    %66 = vector.broadcast %64 : vector<1x128xf32> to vector<8x128xf32>
    %67 = arith.mulf %65, %66 : vector<8x128xf32>
    %68 = arith.addf %43, %67 : vector<8x128xf32>
    %69 = vector.extract_strided_slice %3 {offsets = [3, 2, 0], sizes = [1, 1, 128], strides = [1, 1, 1]} : vector<4x4x128xf32> to vector<1x1x128xf32>
    %70 = vector.shape_cast %69 : vector<1x1x128xf32> to vector<1x128xf32>
    %71 = vector.broadcast %50 : vector<8x1xf32> to vector<8x128xf32>
    %72 = vector.broadcast %70 : vector<1x128xf32> to vector<8x128xf32>
    %73 = arith.mulf %71, %72 : vector<8x128xf32>
    %74 = arith.addf %49, %73 : vector<8x128xf32>
    %75 = vector.extract_strided_slice %2 {offsets = [0, 3], sizes = [8, 1], strides = [1, 1]} : vector<8x4xf32> to vector<8x1xf32>
    %76 = vector.extract_strided_slice %3 {offsets = [0, 3, 0], sizes = [1, 1, 128], strides = [1, 1, 1]} : vector<4x4x128xf32> to vector<1x1x128xf32>
    %77 = vector.shape_cast %76 : vector<1x1x128xf32> to vector<1x128xf32>
    %78 = vector.broadcast %75 : vector<8x1xf32> to vector<8x128xf32>
    %79 = vector.broadcast %77 : vector<1x128xf32> to vector<8x128xf32>
    %80 = arith.mulf %78, %79 : vector<8x128xf32>
    %81 = arith.addf %56, %80 : vector<8x128xf32>
    %82 = vector.extract_strided_slice %3 {offsets = [1, 3, 0], sizes = [1, 1, 128], strides = [1, 1, 1]} : vector<4x4x128xf32> to vector<1x1x128xf32>
    %83 = vector.shape_cast %82 : vector<1x1x128xf32> to vector<1x128xf32>
    %84 = vector.broadcast %75 : vector<8x1xf32> to vector<8x128xf32>
    %85 = vector.broadcast %83 : vector<1x128xf32> to vector<8x128xf32>
    %86 = arith.mulf %84, %85 : vector<8x128xf32>
    %87 = arith.addf %62, %86 : vector<8x128xf32>
    %88 = vector.extract_strided_slice %3 {offsets = [2, 3, 0], sizes = [1, 1, 128], strides = [1, 1, 1]} : vector<4x4x128xf32> to vector<1x1x128xf32>
    %89 = vector.shape_cast %88 : vector<1x1x128xf32> to vector<1x128xf32>
    %90 = vector.broadcast %75 : vector<8x1xf32> to vector<8x128xf32>
    %91 = vector.broadcast %89 : vector<1x128xf32> to vector<8x128xf32>
    %92 = arith.mulf %90, %91 : vector<8x128xf32>
    %93 = arith.addf %68, %92 : vector<8x128xf32>
    %94 = vector.extract_strided_slice %3 {offsets = [3, 3, 0], sizes = [1, 1, 128], strides = [1, 1, 1]} : vector<4x4x128xf32> to vector<1x1x128xf32>
    %95 = vector.shape_cast %94 : vector<1x1x128xf32> to vector<1x128xf32>
    %96 = vector.broadcast %75 : vector<8x1xf32> to vector<8x128xf32>
    %97 = vector.broadcast %95 : vector<1x128xf32> to vector<8x128xf32>
    %98 = arith.mulf %96, %97 : vector<8x128xf32>
    %99 = arith.addf %74, %98 : vector<8x128xf32>
    %100 = math.exp %93 : vector<8x128xf32>
    %101 = math.exp %99 : vector<8x128xf32>
    %102 = arith.subf %1, %81 : vector<8x128xf32>
    %103 = arith.subf %1, %87 : vector<8x128xf32>
    %104 = arith.mulf %100, %102 : vector<8x128xf32>
    %105 = arith.mulf %101, %103 : vector<8x128xf32>
    %cst = arith.constant 0.000000e+00 : f32
    %106 = vector.broadcast %cst : f32 to vector<8x128xf32>
    %107 = arith.subf %106, %104 : vector<8x128xf32>
    %108 = arith.mulf %107, %102 : vector<8x128xf32>
    %109 = math.exp %108 : vector<8x128xf32>
    %110 = arith.mulf %104, %109 : vector<8x128xf32>
    %cst_6 = arith.constant 0.000000e+00 : f32
    %111 = vector.broadcast %cst_6 : f32 to vector<8x128xf32>
    %112 = arith.subf %111, %105 : vector<8x128xf32>
    %113 = arith.mulf %112, %103 : vector<8x128xf32>
    %114 = math.exp %113 : vector<8x128xf32>
    %115 = arith.mulf %105, %114 : vector<8x128xf32>
    %116 = arith.addf %110, %115 : vector<8x128xf32>
    %cst_7 = arith.constant -2.000000e+00 : f32
    %117 = vector.broadcast %cst_7 : f32 to vector<8x128xf32>
    %118 = arith.mulf %117, %116 : vector<8x128xf32>
    %119 = arith.mulf %118, %118 : vector<8x128xf32>
    %cst_8 = arith.constant dense<0.000000e+00> : vector<8xf32>
    %120 = vector.multi_reduction <add>, %119, %cst_8 [1] : vector<8x128xf32> to vector<8xf32>
    %121 = vector.shape_cast %120 : vector<8xf32> to vector<8x1xf32>
    %cst_9 = arith.constant 1.000000e-24 : f32
    %122 = vector.broadcast %cst_9 : f32 to vector<8x1xf32>
    %123 = arith.maximumf %121, %122 : vector<8x1xf32>
    %124 = math.rsqrt %123 : vector<8x1xf32>
    %125 = vector.broadcast %124 : vector<8x1xf32> to vector<8x128xf32>
    %126 = arith.mulf %118, %125 : vector<8x128xf32>
    %c0_10 = arith.constant 0 : index
    %c0_11 = arith.constant 0 : index
    %127 = vector.load %arg4[%c0_10, %c0_11] : memref<8x128xf32, #tpu.memory_space<vmem>>, vector<8x128xf32>
    tpu.vector_store %arg4[%c0_10, %c0_11], %126 {strides = array<i32>} : memref<8x128xf32, #tpu.memory_space<vmem>>, vector<8x128xf32>,
    return
  }
  func.func @transform_0(%arg0: i32) -> (i32, i32) {
    %c0_i32 = arith.constant 0 : i32
    %c0_i32_0 = arith.constant 0 : i32
    return %arg0, %c0_i32 : i32, i32
  }
  func.func @transform_1(%arg0: i32) -> (i32, i32) {
    %c0_i32 = arith.constant 0 : i32
    %c0_i32_0 = arith.constant 0 : i32
    return %arg0, %c0_i32 : i32, i32
  }
  func.func @transform_2(%arg0: i32) -> (i32, i32, i32) {
    %c0_i32 = arith.constant 0 : i32
    %c0_i32_0 = arith.constant 0 : i32
    %c0_i32_1 = arith.constant 0 : i32
    %c0_i32_2 = arith.constant 0 : i32
    return %c0_i32, %c0_i32_0, %c0_i32_1 : i32, i32, i32
  }
  func.func @transform_3(%arg0: i32) -> (i32, i32) {
    %c0_i32 = arith.constant 0 : i32
    %c0_i32_0 = arith.constant 0 : i32
    return %arg0, %c0_i32 : i32, i32
  }
}

</mosaic_0001>

<llo_original>
// kernel: tpu_custom_call.1
$region0: #{tpu_custom_call.1}
  #allocation0 [shape = 'u32[]', space=smem, size = 0x4, offset = 0x4, fixed_abs, tag = 'smem constant byte address 0x4 - core index']
  #allocation1 [shape = 'u32[144,128]{1,0:T(1,128)}', space=vmem, size = 0x12000, scoped, tag = 'internal scratch']
  %s0 = inlined_call_operand.vmem [shape: f32[8,4], index: 0, kind: input, shape index: {}]
  %s1 = inlined_call_operand.hbm [shape: bf16[8,128], index: 1, kind: input, shape index: {}]
  %s2 = inlined_call_operand.vmem [shape: f32[4,4,128], index: 2, kind: input, shape index: {}]
  %s3 = inlined_call_operand.hbm [shape: f32[8,128], index: 3, kind: output, shape index: {}]
  %s4 = sld [smem:[#allocation0]]
  $region26: #{tpu_custom_call.1} parent=0
    _
  %s6 = ssub.s32 1, %s4
  %s7 = scalar_select 0, %s6, %s4
  $region1: #{tpu_custom_call.1} parent=0
    #allocation2 [shape = 'u8[2048]{0}', space=vmem, size = 0x800, scoped, tag = 'input window, operand 1, single buffered']
    #allocation3 [shape = 's32[1]{0}', space=sflag, size = 0x4, scoped, tag = 'scoped memory for tpu_custom_call.1']
    #allocation4 [shape = 's32[1]{0}', space=sflag, size = 0x4, scoped, tag = 'scoped memory for tpu_custom_call.1']
    #allocation5 [shape = 'u8[4096]{0}', space=vmem, size = 0x1000, scoped, tag = 'output window, operand 0, single buffered']
    %8 = vsyncpa [#allocation3], 0
    %9 = vsyncpa [#allocation4], 0
    // Predicated region
    $region2: #{tpu_custom_call.1} parent=1 // pred_check
      _
    $region3: #{tpu_custom_call.1} parent=1 // pred_check_branch
      %11 = sbr.rel (0) target = $region5
    $region4: #{tpu_custom_call.1} parent=1 // pred_region
      _
    $region5: #{tpu_custom_call.1} parent=1 // pred_fallthru
      _
    // Predicated region
    $region6: #{tpu_custom_call.1} parent=1 // pred_check
      _
    $region7: #{tpu_custom_call.1} parent=1 // pred_check_branch
      %13 = sbr.rel (0) target = $region9
    $region8: #{tpu_custom_call.1} parent=1 // pred_region
      %s15 = ssub.s32 64, 64
      %16 = vsyncadd [#allocation3], %s15
      %s18 = sshll.u32 [#allocation2], 4
      %s19 = int_to_ptr.vmem [resolvable:$true] %s18
      %21 = dma.hbm_to_vmem [thread:$0]  %s1, 64, %s19, [#allocation3]
    $region9: #{tpu_custom_call.1} parent=1 // pred_fallthru
      _
    // Predicated region
    $region10: #{tpu_custom_call.1} parent=1 // pred_check
      _
    $region11: #{tpu_custom_call.1} parent=1 // pred_check_branch
      %23 = sbr.rel (0) target = $region13
    $region12: #{tpu_custom_call.1} parent=1 // pred_region
      _
    $region13: #{tpu_custom_call.1} parent=1 // pred_fallthru
      _
    // Predicated region
    $region14: #{tpu_custom_call.1} parent=1 // pred_check
      _
    $region15: #{tpu_custom_call.1} parent=1 // pred_check_branch
      %25 = sbr.rel (0) target = $region17
    $region16: #{tpu_custom_call.1} parent=1 // pred_region
      %26 = dma.done [#allocation3], 64
    $region17: #{tpu_custom_call.1} parent=1 // pred_fallthru
      _
    %v27 = vld [vmem:[#allocation2] sm:$0xf]
    %v28 = vunpack.c.l.bf16 %v27
    %v29 = vld [vmem:[%s0] sm:$0xff]
    %v30 = vld [vmem:[%s2] sm:$0xf]
    %v31 = vld [vmem:[%s2 + $0x4] sm:$0xf]
    %v32 = vld [vmem:[%s2 + $0x8] sm:$0xf]
    %v33 = vld [vmem:[%s2 + $0xc] sm:$0xf]
    %35 = vset.pattern.permute.xlu0 0
    %36 = vperm.xlu0 %35, %v29
    %v37 = vpop.permute.xlu0 %36
    %v39 = vlaneseq
    %v40 = vshrl.u32 %v39, 7
    %v41 = vsub.s32 0, %v40
    %v42 = vrot.slane %v30, %v41
    %v43 = vmul.f32 %v37, %v42
    %v44 = vlaneseq
    %v45 = vshrl.u32 %v44, 7
    %v46 = vsub.s32 0, %v45
    %v47 = vrot.slane %v31, %v46
    %v48 = vmul.f32 %v37, %v47
    %v49 = vlaneseq
    %v50 = vshrl.u32 %v49, 7
    %v51 = vsub.s32 0, %v50
    %v52 = vrot.slane %v32, %v51
    %v53 = vmul.f32 %v37, %v52
    %v54 = vlaneseq
    %v55 = vshrl.u32 %v54, 7
    %v56 = vsub.s32 0, %v55
    %v57 = vrot.slane %v33, %v56
    %v58 = vmul.f32 %v37, %v57
    %59 = vset.pattern.permute.xlu0 1
    %60 = vperm.xlu0 %59, %v29
    %v61 = vpop.permute.xlu0 %60
    %v63 = vlaneseq
    %v64 = vshrl.u32 %v63, 7
    %v65 = vsub.s32 1, %v64
    %v66 = vrot.slane %v30, %v65
    %v67 = vmul.f32 %v61, %v66
    %v68 = vadd.f32 %v43, %v67
    %v69 = vlaneseq
    %v70 = vshrl.u32 %v69, 7
    %v71 = vsub.s32 1, %v70
    %v72 = vrot.slane %v31, %v71
    %v73 = vmul.f32 %v61, %v72
    %v74 = vadd.f32 %v48, %v73
    %v75 = vlaneseq
    %v76 = vshrl.u32 %v75, 7
    %v77 = vsub.s32 1, %v76
    %v78 = vrot.slane %v32, %v77
    %v79 = vmul.f32 %v61, %v78
    %v80 = vadd.f32 %v53, %v79
    %v81 = vlaneseq
    %v82 = vshrl.u32 %v81, 7
    %v83 = vsub.s32 1, %v82
    %v84 = vrot.slane %v33, %v83
    %v85 = vmul.f32 %v61, %v84
    %v86 = vadd.f32 %v58, %v85
    %87 = vset.pattern.permute.xlu0 2
    %88 = vperm.xlu0 %87, %v29
    %v89 = vpop.permute.xlu0 %88
    %v91 = vlaneseq
    %v92 = vshrl.u32 %v91, 7
    %v93 = vsub.s32 2, %v92
    %v94 = vrot.slane %v30, %v93
    %v95 = vmul.f32 %v89, %v94
    %v96 = vadd.f32 %v68, %v95
    %v97 = vlaneseq
    %v98 = vshrl.u32 %v97, 7
    %v99 = vsub.s32 2, %v98
    %v100 = vrot.slane %v31, %v99
    %v101 = vmul.f32 %v89, %v100
    %v102 = vadd.f32 %v74, %v101
    %v103 = vlaneseq
    %v104 = vshrl.u32 %v103, 7
    %v105 = vsub.s32 2, %v104
    %v106 = vrot.slane %v32, %v105
    %v107 = vmul.f32 %v89, %v106
    %v108 = vadd.f32 %v80, %v107
    %v109 = vlaneseq
    %v110 = vshrl.u32 %v109, 7
    %v111 = vsub.s32 2, %v110
    %v112 = vrot.slane %v33, %v111
    %v113 = vmul.f32 %v89, %v112
    %v114 = vadd.f32 %v86, %v113
    %115 = vset.pattern.permute.xlu0 3
    %116 = vperm.xlu0 %115, %v29
    %v117 = vpop.permute.xlu0 %116
    %v119 = vlaneseq
    %v120 = vshrl.u32 %v119, 7
    %v121 = vsub.s32 3, %v120
    %v122 = vrot.slane %v30, %v121
    %v123 = vmul.f32 %v117, %v122
    %v124 = vadd.f32 %v96, %v123
    %v125 = vlaneseq
    %v126 = vshrl.u32 %v125, 7
    %v127 = vsub.s32 3, %v126
    %v128 = vrot.slane %v31, %v127
    %v129 = vmul.f32 %v117, %v128
    %v130 = vadd.f32 %v102, %v129
    %v131 = vlaneseq
    %v132 = vshrl.u32 %v131, 7
    %v133 = vsub.s32 3, %v132
    %v134 = vrot.slane %v32, %v133
    %v135 = vmul.f32 %v117, %v134
    %v136 = vadd.f32 %v108, %v135
    %v137 = vlaneseq
    %v138 = vshrl.u32 %v137, 7
    %v139 = vsub.s32 3, %v138
    %v140 = vrot.slane %v33, %v139
    %v141 = vmul.f32 %v117, %v140
    %v142 = vadd.f32 %v114, %v141
    %v143 = vmul.f32 %v136, 1.442695
    %v144 = vpow.pop %v143
    %v145 = vmul.f32 %v142, 1.442695
    %v146 = vpow.pop %v145
    %v147 = vsub.f32 %v28, %v124
    %v148 = vsub.f32 %v28, %v130
    %v149 = vmul.f32 %v144, %v147
    %v150 = vmul.f32 %v146, %v148
    %v151 = vsub.f32 0.0, %v149
    %v152 = vmul.f32 %v151, %v147
    %v153 = vmul.f32 %v152, 1.442695
    %v154 = vpow.pop %v153
    %v155 = vmul.f32 %v149, %v154
    %v156 = vsub.f32 0.0, %v150
    %v157 = vmul.f32 %v156, %v148
    %v158 = vmul.f32 %v157, 1.442695
    %v159 = vpow.pop %v158
    %v160 = vmul.f32 %v150, %v159
    %v161 = vadd.f32 %v155, %v160
    %v162 = vmul.f32 %v161, -2.0
    %v163 = vmul.f32 %v162, %v162
    %164 = vadd.xlane.f32.xlu0 %v163
    %v165 = vpop.xlane.xlu0 %164
    %v166 = vmax.f32 %v165, 1e-24
    %v167 = vrsqrt.pop %v166
    %v168 = vmul.f32 %v162, %v167
    %169 = vst [vmem:[#allocation5] sm:$0xff] %v168
    // Predicated region
    $region18: #{tpu_custom_call.1} parent=1 // pred_check
      _
    $region19: #{tpu_custom_call.1} parent=1 // pred_check_branch
      %171 = sbr.rel (0) target = $region21
    $region20: #{tpu_custom_call.1} parent=1 // pred_region
      %s173 = ssub.s32 128, 128
      %174 = vsyncadd [#allocation4], %s173
      %s176 = sshll.u32 [#allocation5], 4
      %s177 = int_to_ptr.vmem [resolvable:$true] %s176
      %179 = dma.vmem_to_hbm [thread:$0]  %s177, 128, %s3, [#allocation4]
    $region21: #{tpu_custom_call.1} parent=1 // pred_fallthru
      _
    // Predicated region
    $region22: #{tpu_custom_call.1} parent=1 // pred_check
      _
    $region23: #{tpu_custom_call.1} parent=1 // pred_check_branch
      %181 = sbr.rel (0) target = $region25
    $region24: #{tpu_custom_call.1} parent=1 // pred_region
      %182 = dma.done [#allocation4], 128
    $region25: #{tpu_custom_call.1} parent=1 // pred_fallthru
      _
    %183 = vsyncpa [#allocation3], 1
    %184 = vsyncpa [#allocation4], 1

</llo_original>
